<compile_context>
chip_gen: v6e
topology: v6e:2x2x1
jax: 0.10.0
libtpu: 0.0.40
codegen_flags: <defaults>
</compile_context>

<pallas_src>
import functools

import jax
import jax.numpy as jnp
from jax import lax
from jax.experimental import pallas as pl
from jax.experimental.pallas import tpu as pltpu

ALPHA = 0.25   # matches the nn.Module default buffer
GAMMA = 2.0

# TODO(synk): per-class (1-D tensor) alpha buffer is not supported; scalar alpha only.


# --------------------------------------------------------------------------- #
# element-wise math shared by both kernels
# --------------------------------------------------------------------------- #
def _focal_elements(x, t, *, alpha, gamma, binary_targets):
    """Per-element focal loss, numerically-stable BCE-with-logits form."""
    s = jnp.exp(-jnp.abs(x))                       # exp(-|x|)
    bce = jnp.maximum(x, 0.0) - x * t + jnp.log1p(s)
    if binary_targets:
        # pt = sigmoid(x) if t==1 else sigmoid(-x); reuse s, skip exp(-bce).
        agrees = (x >= 0.0) == (t > 0.5)
        pt = jnp.where(agrees, 1.0, s) * pl.reciprocal(1.0 + s, approx=False)
    else:
        pt = jnp.exp(-bce)
    one_minus_pt = 1.0 - pt
    if gamma == 2.0:
        mod = one_minus_pt * one_minus_pt          # avoid pow -> exp/log on EUP
    elif gamma == 1.0:
        mod = one_minus_pt
    elif gamma == 0.0:
        mod = 1.0
    else:
        mod = one_minus_pt ** gamma
    return (alpha * mod) * bce


def _mask_tail(focal, row_start, full_rows, tail_cols):
    """Zero out elements whose flat index >= B*C (tail blocks / lane padding)."""
    rows = row_start + lax.broadcasted_iota(jnp.int32, focal.shape, 0)
    valid = rows < full_rows
    if tail_cols:
        cols = lax.broadcasted_iota(jnp.int32, focal.shape, 1)
        valid = valid | ((rows == full_rows) & (cols < tail_cols))
    return jnp.where(valid, focal, 0.0)


# --------------------------------------------------------------------------- #
# kernels
# --------------------------------------------------------------------------- #
def _focal_small_kernel(logits_ref, targets_ref, out_ref, *,
                        alpha, gamma, binary_targets,
                        need_mask, full_rows, tail_cols):
    x = logits_ref[...].astype(jnp.float32)
    t = targets_ref[...].astype(jnp.float32)
    focal = _focal_elements(x, t, alpha=alpha, gamma=gamma,
                            binary_targets=binary_targets)
    if need_mask:
        focal = _mask_tail(focal, 0, full_rows, tail_cols)
    out_ref[0, 0] = jnp.sum(focal)


def _focal_grid_kernel(logits_ref, targets_ref, out_ref, acc_ref, *,
                       alpha, gamma, binary_targets, row_tile, tiles_per_core,
                       need_mask, full_rows, tail_cols):
    c = pl.program_id(0)                  # core-split index (parallel)
    i = pl.program_id(1)                  # row-tile index   (reduction)

    @pl.when(i == 0)
    def _():
        acc_ref[...] = jnp.zeros_like(acc_ref)

    x = logits_ref[...].astype(jnp.float32)
    t = targets_ref[...].astype(jnp.float32)
    focal = _focal_elements(x, t, alpha=alpha, gamma=gamma,
                            binary_targets=binary_targets)

    if need_mask:
        # Tail blocks may contain unspecified VMEM data -> mask BEFORE accumulate.
        row_start = (c * tiles_per_core + i) * row_tile
        focal = _mask_tail(focal, row_start, full_rows, tail_cols)

    # Fold (rt, W) -> (8, W) with pure VPU adds; keeps the read-modify-write
    # accumulator tiny and frees VMEM for bigger input tiles.
    width = focal.shape[-1]
    if row_tile > 8:
        folded = jnp.sum(jnp.reshape(focal, (row_tile // 8, 8, width)), axis=0)
    else:
        folded = focal
    acc_ref[...] += folded

    @pl.when(i == pl.num_programs(1) - 1)
    def _():
        out_ref[0, 0] = jnp.sum(acc_ref[...])


# --------------------------------------------------------------------------- #
# wrapper
# --------------------------------------------------------------------------- #
def _default_num_core_splits():
    try:
        kind = jax.devices()[0].device_kind.lower()
    except Exception:
        return 1
    # 2 TensorCores per chip on v7x; 1 on v5e / v6e.
    return 2 if "7" in kind else 1


def _vmem_limit_bytes():
    try:
        cap = int(pltpu.get_tpu_info().vmem_capacity_bytes)
    except Exception:
        cap = 64 * 1024 * 1024
    # 96 MiB on 128-MiB chips (v5e/v6e), 48 MiB on v7x (64 MiB physical / TC).
    return min(cap * 3 // 4, 96 * 1024 * 1024)


def focal_loss_multilabel(logits, targets, *, alpha=ALPHA, gamma=GAMMA,
                          binary_targets=False,
                          target_tile_bytes=2 * 1024 * 1024,
                          small_problem_bytes=4 * 1024 * 1024,
                          num_core_splits=None):
    """Mean multi-label focal loss over all elements of (B, C) logits/targets.

    `binary_targets=True` enables a transcendental-saving pt path that is
    exact only for 0/1 labels. Targets may be bf16 (exact for 0/1 labels);
    the kernel upcasts to f32 internally.
    """
    B, C = logits.shape
    assert targets.shape == (B, C)
    n_valid = B * C
    inv_n = 1.0 / float(n_valid)

    # ---- lane-dense 2-D view -------------------------------------------------
    if C % 128 == 0:
        W, R = C, B
        l2d, t2d = logits, targets
    else:
        # Non-128-aligned class count: flatten to a lane-dense (R, 128) slab so
        # no DMA/lane bandwidth is wasted on masked lanes.
        W = 128
        R = -(-n_valid // W)
        pad = R * W - n_valid

        def _flat(a):
            a = a.reshape(-1)
            if pad:
                a = jnp.pad(a, (0, pad))
            return a.reshape(R, W)

        l2d, t2d = _flat(logits), _flat(targets)

    full_rows = n_valid // W
    tail_cols = n_valid % W

    # ---- small-problem fast path: single block, no pipeline machinery --------
    if R * W * 4 * 2 <= small_problem_bytes:
        need_mask = (R * W) != n_valid
        kernel = functools.partial(
            _focal_small_kernel, alpha=float(alpha), gamma=float(gamma),
            binary_targets=binary_targets, need_mask=need_mask,
            full_rows=full_rows, tail_cols=tail_cols)
        total = pl.pallas_call(
            kernel,
            out_shape=jax.ShapeDtypeStruct((1, 1), jnp.float32),
            grid=(1,),
            in_specs=[pl.BlockSpec((R, W), lambda i: (0, 0)),
                      pl.BlockSpec((R, W), lambda i: (0, 0))],
            out_specs=pl.BlockSpec((1, 1), lambda i: (0, 0),
                                   memory_space=pltpu.SMEM),
        )(l2d, t2d)
        return total[0, 0] * inv_n

    # ---- generation-aware, byte-targeted tile sizing --------------------------
    vmem_limit = _vmem_limit_bytes()
    # 2 inputs x 2 pipeline buffers + whole-tile elementwise temporaries.
    max_tile_bytes = max(512 * 1024, (vmem_limit - (2 << 20)) // 10)
    tile_bytes = min(int(target_tile_bytes), max_tile_bytes)

    bytes_per_row = W * 4                                   # f32 compute path
    rt = max(32, (tile_bytes // bytes_per_row) // 32 * 32)  # multiple of 32
    rt = min(rt, -(-R // 32) * 32)                          # never taller than array
    total_tiles = -(-R // rt)

    if num_core_splits is None:
        num_core_splits = _default_num_core_splits()
    splits = max(1, min(int(num_core_splits), total_tiles))
    tiles_per_core = -(-total_tiles // splits)

    need_mask = (splits * tiles_per_core * rt * W) != n_valid
    last_block = total_tiles - 1

    def in_map(c, i):
        # Clamp so over-covering (core-split rounding / tail) never DMAs fully
        # out of bounds; masked contributions are zeroed in-kernel.
        return (jnp.minimum(c * tiles_per_core + i, last_block), 0)

    kernel = functools.partial(
        _focal_grid_kernel, alpha=float(alpha), gamma=float(gamma),
        binary_targets=binary_targets, row_tile=rt,
        tiles_per_core=tiles_per_core, need_mask=need_mask,
        full_rows=full_rows, tail_cols=tail_cols)

    partials = pl.pallas_call(
        kernel,
        out_shape=jax.ShapeDtypeStruct((splits, 1), jnp.float32),
        grid_spec=pltpu.PrefetchScalarGridSpec(
            num_scalar_prefetch=0,
            grid=(splits, tiles_per_core),
            in_specs=[pl.BlockSpec((rt, W), in_map),
                      pl.BlockSpec((rt, W), in_map)],
            out_specs=pl.BlockSpec((1, 1), lambda c, i: (c, 0),
                                   memory_space=pltpu.SMEM),
            scratch_shapes=[pltpu.VMEM((8, W), jnp.float32)],
        ),
        compiler_params=pltpu.CompilerParams(
            dimension_semantics=("parallel", "arbitrary"),
            vmem_limit_bytes=vmem_limit,
        ),
    )(l2d, t2d)

    return jnp.sum(partials) * inv_n


# --------------------------------------------------------------------------- #
# reference + self-test
# --------------------------------------------------------------------------- #
def _reference(logits, targets, alpha=ALPHA, gamma=GAMMA):
    x = logits.astype(jnp.float32)
    t = targets.astype(jnp.float32)
    bce = jnp.maximum(x, 0.0) - x * t + jnp.log1p(jnp.exp(-jnp.abs(x)))
    pt = jnp.exp(-bce)
    return jnp.mean(alpha * (1.0 - pt) ** gamma * bce)


if __name__ == "__main__":
    key = jax.random.PRNGKey(0)
    k1, k2, k3, k4, k5, k6 = jax.random.split(key, 6)

    # case 1: aligned C, small -> single-block fast path
    B, C = 16, 128
    logits = jax.random.normal(k1, (B, C), dtype=jnp.float32) * 2.0
    targets = (jax.random.uniform(k2, (B, C)) > 0.5).astype(jnp.float32)
    loss = jax.block_until_ready(focal_loss_multilabel(logits, targets))
    ref = _reference(logits, targets)
    assert jnp.allclose(loss, ref, rtol=1e-5, atol=1e-6), (loss, ref)

    # same case with the binary-target transcendental-saving pt path
    loss_b = jax.block_until_ready(
        focal_loss_multilabel(logits, targets, binary_targets=True))
    assert jnp.allclose(loss_b, ref, rtol=1e-5, atol=1e-6), (loss_b, ref)

    # case 2: C % 128 != 0 -> lane-dense flatten path; bf16 targets (exact 0/1)
    B2, C2 = 13, 96
    logits2 = jax.random.normal(k3, (B2, C2), dtype=jnp.float32)
    targets2 = (jax.random.uniform(k4, (B2, C2)) > 0.5).astype(jnp.bfloat16)
    loss2 = jax.block_until_ready(focal_loss_multilabel(logits2, targets2))
    ref2 = _reference(logits2, targets2.astype(jnp.float32))
    assert jnp.allclose(loss2, ref2, rtol=1e-5, atol=1e-6), (loss2, ref2)

    # case 3: force the tiled/grid path (core split + tail masking + clamp)
    B3, C3 = 300, 128
    logits3 = jax.random.normal(k5, (B3, C3), dtype=jnp.float32)
    targets3 = (jax.random.uniform(k6, (B3, C3)) > 0.5).astype(jnp.float32)
    loss3 = jax.block_until_ready(
        focal_loss_multilabel(logits3, targets3, small_problem_bytes=0,
                              target_tile_bytes=64 * 1024, num_core_splits=2))
    ref3 = _reference(logits3, targets3)
    assert jnp.allclose(loss3, ref3, rtol=1e-4, atol=1e-6), (loss3, ref3)

    print("KERNEL_OK")
</pallas_src>

<mosaic_0001>
module attributes {stable_mosaic.version = 11 : i64} {
  func.func @_focal_small_kernel(%arg0: i32, %arg1: memref<16x128xf32, #tpu.memory_space<vmem>>, %arg2: memref<16x128xf32, #tpu.memory_space<vmem>>, %arg3: memref<1x1xf32, #tpu.memory_space<smem>>) attributes {dimension_semantics = [#tpu.dimension_semantics<arbitrary>], iteration_bounds = array<i64: 1>, scalar_prefetch = 0 : i64, scratch_operands = 0 : i64, tpu.core_type = #tpu.core_type<tc>, window_params = [{pipeline_mode = #tpu.pipeline_mode<synchronous>, transform_indices = @transform_0, window_bounds = array<i64: 16, 128>}, {pipeline_mode = #tpu.pipeline_mode<synchronous>, transform_indices = @transform_1, window_bounds = array<i64: 16, 128>}, {transform_indices = @transform_2, window_bounds = array<i64: 1, 1>}]} {
    %c0 = arith.constant 0 : index
    %c0_0 = arith.constant 0 : index
    %0 = vector.load %arg1[%c0, %c0_0] : memref<16x128xf32, #tpu.memory_space<vmem>>, vector<16x128xf32>
    %c0_1 = arith.constant 0 : index
    %c0_2 = arith.constant 0 : index
    %1 = vector.load %arg2[%c0_1, %c0_2] : memref<16x128xf32, #tpu.memory_space<vmem>>, vector<16x128xf32>
    %2 = math.absf %0 : vector<16x128xf32>
    %cst = arith.constant 0.000000e+00 : f32
    %3 = vector.broadcast %cst : f32 to vector<16x128xf32>
    %4 = arith.subf %3, %2 : vector<16x128xf32>
    %5 = math.exp %4 : vector<16x128xf32>
    %cst_3 = arith.constant 0.000000e+00 : f32
    %6 = vector.broadcast %cst_3 : f32 to vector<16x128xf32>
    %7 = arith.maximumf %0, %6 : vector<16x128xf32>
    %8 = arith.mulf %0, %1 : vector<16x128xf32>
    %9 = arith.subf %7, %8 : vector<16x128xf32>
    %10 = math.log1p %5 : vector<16x128xf32>
    %11 = arith.addf %9, %10 : vector<16x128xf32>
    %cst_4 = arith.constant 0.000000e+00 : f32
    %12 = vector.broadcast %cst_4 : f32 to vector<16x128xf32>
    %13 = arith.subf %12, %11 : vector<16x128xf32>
    %14 = math.exp %13 : vector<16x128xf32>
    %cst_5 = arith.constant 1.000000e+00 : f32
    %15 = vector.broadcast %cst_5 : f32 to vector<16x128xf32>
    %16 = arith.subf %15, %14 : vector<16x128xf32>
    %17 = arith.mulf %16, %16 : vector<16x128xf32>
    %cst_6 = arith.constant 2.500000e-01 : f32
    %18 = vector.broadcast %cst_6 : f32 to vector<16x128xf32>
    %19 = arith.mulf %18, %17 : vector<16x128xf32>
    %20 = arith.mulf %19, %11 : vector<16x128xf32>
    %21 = vector.shape_cast %20 : vector<16x128xf32> to vector<1x16x128xf32>
    %cst_7 = arith.constant dense<0.000000e+00> : vector<1xf32>
    %22 = vector.multi_reduction <add>, %21, %cst_7 [1, 2] : vector<1x16x128xf32> to vector<1xf32>
    %23 = vector.shape_cast %22 : vector<1xf32> to vector<1x1x1xf32>
    %24 = vector.extract %23[0, 0, 0] : f32 from vector<1x1x1xf32>
    %c0_8 = arith.constant 0 : index
    %c0_9 = arith.constant 0 : index
    %25 = memref.load %arg3[%c0_8, %c0_9] : memref<1x1xf32, #tpu.memory_space<smem>>
    memref.store %24, %arg3[%c0_8, %c0_9] : memref<1x1xf32, #tpu.memory_space<smem>>
    return
  }
  func.func @transform_0(%arg0: i32) -> (i32, i32) {
    %c0_i32 = arith.constant 0 : i32
    %c0_i32_0 = arith.constant 0 : i32
    %c0_i32_1 = arith.constant 0 : i32
    return %c0_i32, %c0_i32_0 : i32, i32
  }
  func.func @transform_1(%arg0: i32) -> (i32, i32) {
    %c0_i32 = arith.constant 0 : i32
    %c0_i32_0 = arith.constant 0 : i32
    %c0_i32_1 = arith.constant 0 : i32
    return %c0_i32, %c0_i32_0 : i32, i32
  }
  func.func @transform_2(%arg0: i32) -> (i32, i32) {
    %c0_i32 = arith.constant 0 : i32
    %c0_i32_0 = arith.constant 0 : i32
    %c0_i32_1 = arith.constant 0 : i32
    return %c0_i32, %c0_i32_0 : i32, i32
  }
}

</mosaic_0001>

<llo_original>
// kernel: tpu_custom_call.1
$region0: #{tpu_custom_call.1}
  #allocation0 [shape = 'u32[]', space=smem, size = 0x4, offset = 0x4, fixed_abs, tag = 'smem constant byte address 0x4 - core index']
  #allocation1 [shape = 'u32[144,128]{1,0:T(1,128)}', space=vmem, size = 0x12000, scoped, tag = 'internal scratch']
  %s0 = inlined_call_operand.hbm [shape: f32[16,128], index: 0, kind: input, shape index: {}]
  %s1 = inlined_call_operand.hbm [shape: f32[16,128], index: 1, kind: input, shape index: {}]
  %s2 = inlined_call_operand.hbm [shape: f32[1,1], index: 2, kind: output, shape index: {}]
  %s3 = sld [smem:[#allocation0]]
  $region26: #{tpu_custom_call.1} parent=0
    _
  %s5 = ssub.s32 1, %s3
  %s6 = scalar_select 0, %s5, %s3
  $region1: #{tpu_custom_call.1} parent=0
    #allocation2 [shape = 'u8[8192]{0}', space=vmem, size = 0x2000, scoped, tag = 'input window, operand 0, single buffered']
    #allocation3 [shape = 's32[1]{0}', space=sflag, size = 0x4, scoped, tag = 'scoped memory for tpu_custom_call.1']
    #allocation4 [shape = 's32[1]{0}', space=sflag, size = 0x4, scoped, tag = 'scoped memory for tpu_custom_call.1']
    #allocation5 [shape = 'u8[8192]{0}', space=vmem, size = 0x2000, scoped, tag = 'input window, operand 1, single buffered']
    #allocation6 [shape = 's32[1]{0}', space=sflag, size = 0x4, scoped, tag = 'scoped memory for tpu_custom_call.1']
    #allocation7 [shape = 'u8[512]{0}', space=smem, size = 0x200, scoped, tag = 'output window, operand 0, single buffered']
    %7 = vsyncpa [#allocation3], 0
    %8 = vsyncpa [#allocation6], 0
    %9 = vsyncpa [#allocation4], 0
    // Predicated region
    $region2: #{tpu_custom_call.1} parent=1 // pred_check
      _
    $region3: #{tpu_custom_call.1} parent=1 // pred_check_branch
      %11 = sbr.rel (0) target = $region5
    $region4: #{tpu_custom_call.1} parent=1 // pred_region
      %s13 = ssub.s32 256, 256
      %14 = vsyncadd [#allocation3], %s13
      %s15 = sshll.u32 [#allocation2], 4
      %s16 = int_to_ptr.vmem [resolvable:$true] %s15
      %21 = dma.hbm_to_vmem [thread:$0]  %s0, 256, %s16, [#allocation3], 128, 128, 8
    $region5: #{tpu_custom_call.1} parent=1 // pred_fallthru
      _
    // Predicated region
    $region6: #{tpu_custom_call.1} parent=1 // pred_check
      _
    $region7: #{tpu_custom_call.1} parent=1 // pred_check_branch
      %23 = sbr.rel (0) target = $region9
    $region8: #{tpu_custom_call.1} parent=1 // pred_region
      %s25 = ssub.s32 256, 256
      %26 = vsyncadd [#allocation6], %s25
      %s27 = sshll.u32 [#allocation5], 4
      %s28 = int_to_ptr.vmem [resolvable:$true] %s27
      %33 = dma.hbm_to_vmem [thread:$0]  %s1, 256, %s28, [#allocation6], 128, 128, 8
    $region9: #{tpu_custom_call.1} parent=1 // pred_fallthru
      _
    // Predicated region
    $region10: #{tpu_custom_call.1} parent=1 // pred_check
      _
    $region11: #{tpu_custom_call.1} parent=1 // pred_check_branch
      %35 = sbr.rel (0) target = $region13
    $region12: #{tpu_custom_call.1} parent=1 // pred_region
      %36 = dma.done [#allocation3], 256
    $region13: #{tpu_custom_call.1} parent=1 // pred_fallthru
      _
    // Predicated region
    $region14: #{tpu_custom_call.1} parent=1 // pred_check
      _
    $region15: #{tpu_custom_call.1} parent=1 // pred_check_branch
      %38 = sbr.rel (0) target = $region17
    $region16: #{tpu_custom_call.1} parent=1 // pred_region
      %39 = dma.done [#allocation6], 256
    $region17: #{tpu_custom_call.1} parent=1 // pred_fallthru
      _
    %v40 = vld [vmem:[#allocation2] sm:$0xff]
    %v41 = vld [vmem:[#allocation2 + $0x8] sm:$0xff]
    %v42 = vld [vmem:[#allocation5] sm:$0xff]
    %v43 = vld [vmem:[#allocation5 + $0x8] sm:$0xff]
    %v44 = vand.u32 2147483647, %v40
    %v45 = vand.u32 2147483647, %v41
    %v46 = vsub.f32 0.0, %v44
    %v47 = vsub.f32 0.0, %v45
    %v48 = vmul.f32 %v46, 1.442695
    %v49 = vpow.pop %v48
    %v50 = vmul.f32 %v47, 1.442695
    %v51 = vpow.pop %v50
    %v52 = vmax.f32 %v40, 0.0
    %v53 = vmax.f32 %v41, 0.0
    %v54 = vmul.f32 %v40, %v42
    %v55 = vmul.f32 %v41, %v43
    %v56 = vsub.f32 %v52, %v54
    %v57 = vsub.f32 %v53, %v55
    %v58 = vadd.f32 %v49, 1.0
    %v59 = vlog2.pop %v58
    %v60 = vmul.f32 %v59, 0.6931472
    %v61 = vmul.f32 -0.5, %v49
    %v62 = vadd.f32 %v61, 1.0
    %v63 = vmul.f32 %v62, %v49
    %v64 = vand.u32 2147483647, %v49
    %vm65 = vcmp.lt.f32.partialorder %v64, 0.0004427343
    %v66 = vsel %vm65, %v63, %v60
    %v67 = vadd.f32 %v51, 1.0
    %v68 = vlog2.pop %v67
    %v69 = vmul.f32 %v68, 0.6931472
    %v70 = vmul.f32 -0.5, %v51
    %v71 = vadd.f32 %v70, 1.0
    %v72 = vmul.f32 %v71, %v51
    %v73 = vand.u32 2147483647, %v51
    %vm74 = vcmp.lt.f32.partialorder %v73, 0.0004427343
    %v75 = vsel %vm74, %v72, %v69
    %v76 = vadd.f32 %v56, %v66
    %v77 = vadd.f32 %v57, %v75
    %v78 = vsub.f32 0.0, %v76
    %v79 = vsub.f32 0.0, %v77
    %v80 = vmul.f32 %v78, 1.442695
    %v81 = vpow.pop %v80
    %v82 = vmul.f32 %v79, 1.442695
    %v83 = vpow.pop %v82
    %v84 = vsub.f32 1.0, %v81
    %v85 = vsub.f32 1.0, %v83
    %v86 = vmul.f32 %v84, %v84
    %v87 = vmul.f32 %v85, %v85
    %v88 = vmul.f32 %v86, 0.25
    %v89 = vmul.f32 %v87, 0.25
    %v90 = vmul.f32 %v88, %v76
    %v91 = vmul.f32 %v89, %v77
    %v92 = vadd.f32 %v90, %v91
    %93 = vadd.xlane.f32.xlu0 %v92
    %v94 = vpop.xlane.xlu0 %93
    %v95 = vrot.slane %v94, 4
    %v96 = vadd.f32 %v94, %v95
    %v97 = vrot.slane %v96, 2
    %v98 = vadd.f32 %v96, %v97
    %v99 = vrot.slane %v98, 1
    %v100 = vadd.f32 %v98, %v99
    %s101 = vtos %v100
    %s102 = scalar_lea.smem [#allocation7], 0
    %103 = sst [smem:[%s102]] %s101
    // Predicated region
    $region18: #{tpu_custom_call.1} parent=1 // pred_check
      _
    $region19: #{tpu_custom_call.1} parent=1 // pred_check_branch
      %105 = sbr.rel (0) target = $region21
    $region20: #{tpu_custom_call.1} parent=1 // pred_region
      %s107 = ssub.s32 16, 16
      %108 = vsyncadd [#allocation4], %s107
      %111 = dma.smem_to_hbm [#allocation7], 16, %s2, [#allocation4]
    $region21: #{tpu_custom_call.1} parent=1 // pred_fallthru
      _
    // Predicated region
    $region22: #{tpu_custom_call.1} parent=1 // pred_check
      _
    $region23: #{tpu_custom_call.1} parent=1 // pred_check_branch
      %113 = sbr.rel (0) target = $region25
    $region24: #{tpu_custom_call.1} parent=1 // pred_region
      %114 = dma.done [#allocation4], 16
    $region25: #{tpu_custom_call.1} parent=1 // pred_fallthru
      _
    %115 = sfence
    %116 = vsyncpa [#allocation3], 1
    %117 = vsyncpa [#allocation6], 1
    %118 = vsyncpa [#allocation4], 1

</llo_original>
